<compile_context>
chip_gen: v6e
topology: v6e:2x2x1
jax: 0.10.0
libtpu: 0.0.40
codegen_flags: <defaults>
</compile_context>

<pallas_src>
import functools

import jax
import jax.numpy as jnp
from jax.experimental import pallas as pl
from jax.experimental.pallas import tpu as pltpu


def _incep_kernel(x_ref, mask_ref, wf_ref, bf_ref, w3_ref, b3_ref, out_ref,
                  *, W, L, Cp):
    """One grid step = B images, concatenated along the lane axis.

    x_ref    : (Cp, L)        VMEM  activations, L = B*H*W lanes
    mask_ref : (9*Cp, L)      VMEM  per-tap boundary validity (0/1), constant
    wf_ref   : (2*Cp, 9*Cp)   VMEM  fused [1x1 ; 3x3] weight (tap-major cols)
    bf_ref   : (2*Cp, 1)      VMEM  fused [b1 ; b3] bias
    w3_ref   : (Cp, 9*Cp)     VMEM  3x3 weight (tap-major cols)
    b3_ref   : (Cp, 1)        VMEM
    out_ref  : (4*Cp, L)      VMEM  rows: [conv1 | conv3 | conv5 | conv7]
    """
    x = x_ref[...]
    mask = mask_ref[...]          # loaded once, reused by all three conv3's
    wf = wf_ref[...]
    bf = bf_ref[...]
    w3 = w3_ref[...]
    b3 = b3_ref[...]

    # Static lane-roll amounts for the 9 taps (np.roll convention).
    shifts = []
    for kh in range(3):
        for kw in range(3):
            s = (kh - 1) * W + (kw - 1)
            shifts.append((-s) % L)

    def build_big(inp):
        # inp: (Cp, L) -> im2col block (9*Cp, L); rolls hit the XLU slot,
        # one fused mask multiply zeroes all out-of-bounds taps.
        taps = [inp if sh == 0 else pltpu.roll(inp, sh, axis=1)
                for sh in shifts]
        return jnp.concatenate(taps, axis=0) * mask

    # Fused 1x1 + first 3x3: one MXU matmul yields [y1 ; y3].
    yf = jnp.dot(wf, build_big(x), preferred_element_type=jnp.float32)
    yf = jnp.maximum(yf + bf, 0.0)
    out_ref[0:2 * Cp, :] = yf                               # aligned 2-tile store

    y3 = yf[Cp:2 * Cp, :]                                   # tile-aligned slice
    y5 = jnp.maximum(
        jnp.dot(w3, build_big(y3), preferred_element_type=jnp.float32) + b3,
        0.0)
    out_ref[2 * Cp:3 * Cp, :] = y5

    y7 = jnp.maximum(
        jnp.dot(w3, build_big(y5), preferred_element_type=jnp.float32) + b3,
        0.0)
    out_ref[3 * Cp:4 * Cp, :] = y7


def _pick_images_per_step(n, cap=16):
    """Largest divisor of n (<= cap) that still leaves >= 2 grid steps."""
    if n <= 1:
        return 1
    best = 1
    for b in range(1, min(n, cap) + 1):
        if n % b == 0 and n // b >= 2:
            best = b
    return best


def incep_unit_1357(x_nchw, w1, b1, w3, b3, *, images_per_step=None):
    """x_nchw: (N, Cin, H, W); w1: (Cout, Cin, 1, 1); w3: (Cout, Cin, 3, 3)."""
    N, Cin, H, W = x_nchw.shape
    Cout = w1.shape[0]
    assert Cin == Cout, "incep_unit_1357 requires ch_in == ch_out"
    HW = H * W

    Cp = max(8, ((max(Cin, Cout) + 7) // 8) * 8)    # sublane-aligned channels

    B = images_per_step if images_per_step is not None else _pick_images_per_step(N)
    assert N % B == 0
    G = N // B
    L = B * HW
    assert L % 128 == 0, "B*H*W must be a multiple of 128 for lane tiling"

    f32 = jnp.float32

    # ---- activations: (N, Cin, H, W) -> channel-padded, lane-flattened (Cp, N*HW)
    xp = jnp.zeros((N, Cp, HW), f32).at[:, :Cin, :].set(
        x_nchw.reshape(N, Cin, HW).astype(f32))
    x_flat = jnp.transpose(xp, (1, 0, 2)).reshape(Cp, N * HW)

    # ---- weights, zero-padded to Cp, im2col tap-major column order
    w1p = jnp.zeros((Cp, Cp), f32).at[:Cout, :Cin].set(w1[:, :, 0, 0].astype(f32))
    w3p = jnp.zeros((Cp, Cp, 3, 3), f32).at[:Cout, :Cin].set(w3.astype(f32))
    # w3p[o, c, kh, kw] -> w3k[o, (kh*3+kw)*Cp + c]
    w3k = jnp.transpose(w3p, (0, 2, 3, 1)).reshape(Cp, 9 * Cp)
    b1p = jnp.zeros((Cp, 1), f32).at[:Cout, 0].set(b1.astype(f32))
    b3p = jnp.zeros((Cp, 1), f32).at[:Cout, 0].set(b3.astype(f32))

    # Fused first-layer weight: rows 0..Cp = 1x1 conv (center tap t=4 cols),
    # rows Cp..2Cp = 3x3 conv.
    wf = jnp.zeros((2 * Cp, 9 * Cp), f32)
    wf = wf.at[:Cp, 4 * Cp:5 * Cp].set(w1p)
    wf = wf.at[Cp:, :].set(w3k)
    bf = jnp.concatenate([b1p, b3p], axis=0)                 # (2*Cp, 1)

    # ---- precomputed per-tap boundary masks (periodic per image, constant per step)
    pos = jnp.arange(L, dtype=jnp.int32) % HW
    row = pos // W
    col = pos % W
    tap_masks = []
    for kh in range(3):
        for kw in range(3):
            valid = jnp.ones((L,), dtype=jnp.bool_)
            if kh == 0:
                valid = valid & (row >= 1)
            if kh == 2:
                valid = valid & (row < H - 1)
            if kw == 0:
                valid = valid & (col >= 1)
            if kw == 2:
                valid = valid & (col < W - 1)
            tap_masks.append(valid)
    mask = jnp.stack(tap_masks, axis=0).astype(f32)          # (9, L)
    mask = jnp.repeat(mask[:, None, :], Cp, axis=1).reshape(9 * Cp, L)

    kernel = functools.partial(_incep_kernel, W=W, L=L, Cp=Cp)

    out_flat = pl.pallas_call(
        kernel,
        out_shape=jax.ShapeDtypeStruct((4 * Cp, N * HW), f32),
        grid=(G,),
        in_specs=[
            pl.BlockSpec((Cp, L), lambda g: (0, g)),          # activations
            pl.BlockSpec((9 * Cp, L), lambda g: (0, 0)),      # tap masks (const)
            pl.BlockSpec((2 * Cp, 9 * Cp), lambda g: (0, 0)), # fused weight
            pl.BlockSpec((2 * Cp, 1), lambda g: (0, 0)),      # fused bias
            pl.BlockSpec((Cp, 9 * Cp), lambda g: (0, 0)),     # 3x3 weight
            pl.BlockSpec((Cp, 1), lambda g: (0, 0)),          # 3x3 bias
        ],
        out_specs=pl.BlockSpec((4 * Cp, L), lambda g: (0, g)),
        compiler_params=pltpu.CompilerParams(
            dimension_semantics=("parallel",),
            vmem_limit_bytes=32 * 1024 * 1024),
    )(x_flat, mask, wf, bf, w3k, b3p)

    # (4*Cp, N*HW) -> (N, 4*Cout, H, W), dropping the padded channels.
    out = out_flat.reshape(4, Cp, N, H, W)
    out = jnp.transpose(out, (2, 0, 1, 3, 4))[:, :, :Cout]
    return out.reshape(N, 4 * Cout, H, W).astype(x_nchw.dtype)


def _reference(x, w1, b1, w3, b3):
    """Pure-JAX NCHW reference (mirrors the PyTorch forward)."""
    dn = ("NCHW", "OIHW", "NCHW")

    def conv1(v):
        y = jax.lax.conv_general_dilated(v, w1, (1, 1), "VALID",
                                         dimension_numbers=dn)
        return jax.nn.relu(y + b1[None, :, None, None])

    def conv3(v):
        y = jax.lax.conv_general_dilated(v, w3, (1, 1), ((1, 1), (1, 1)),
                                         dimension_numbers=dn)
        return jax.nn.relu(y + b3[None, :, None, None])

    c1 = conv1(x)
    c3 = conv3(x)
    c5 = conv3(c3)
    c7 = conv3(c5)
    return jnp.concatenate([c1, c3, c5, c7], axis=1)


if __name__ == "__main__":
    N, C, H, W = 2, 4, 16, 16        # ch_in == ch_out == 4
    key = jax.random.PRNGKey(0)
    kx, k1w, k1b, k3w, k3b = jax.random.split(key, 5)

    x = jax.random.normal(kx, (N, C, H, W), dtype=jnp.float32)
    w1 = jax.random.normal(k1w, (C, C, 1, 1), dtype=jnp.float32) * 0.2
    b1 = jax.random.normal(k1b, (C,), dtype=jnp.float32) * 0.1
    w3 = jax.random.normal(k3w, (C, C, 3, 3), dtype=jnp.float32) * 0.2
    b3 = jax.random.normal(k3b, (C,), dtype=jnp.float32) * 0.1

    out = jax.block_until_ready(incep_unit_1357(x, w1, b1, w3, b3))
    ref = jax.block_until_ready(_reference(x, w1, b1, w3, b3))

    assert out.shape == (N, 4 * C, H, W), out.shape
    assert jnp.allclose(out, ref, atol=1e-4, rtol=1e-4), float(
        jnp.max(jnp.abs(out - ref)))

    print("KERNEL_OK")
</pallas_src>

<mosaic_0001>
module attributes {stable_mosaic.version = 11 : i64} {
  func.func @_incep_kernel(%arg0: i32, %arg1: memref<8x256xf32, #tpu.memory_space<vmem>>, %arg2: memref<72x256xf32, #tpu.memory_space<vmem>>, %arg3: memref<16x72xf32, #tpu.memory_space<vmem>>, %arg4: memref<16x1xf32, #tpu.memory_space<vmem>>, %arg5: memref<8x72xf32, #tpu.memory_space<vmem>>, %arg6: memref<8x1xf32, #tpu.memory_space<vmem>>, %arg7: memref<32x256xf32, #tpu.memory_space<vmem>>) attributes {dimension_semantics = [#tpu.dimension_semantics<parallel>], iteration_bounds = array<i64: 2>, scalar_prefetch = 0 : i64, scratch_operands = 0 : i64, tpu.core_type = #tpu.core_type<tc>, window_params = [{transform_indices = @transform_0, window_bounds = array<i64: 8, 256>}, {pipeline_mode = #tpu.pipeline_mode<synchronous>, transform_indices = @transform_1, window_bounds = array<i64: 72, 256>}, {pipeline_mode = #tpu.pipeline_mode<synchronous>, transform_indices = @transform_2, window_bounds = array<i64: 16, 72>}, {pipeline_mode = #tpu.pipeline_mode<synchronous>, transform_indices = @transform_3, window_bounds = array<i64: 16, 1>}, {pipeline_mode = #tpu.pipeline_mode<synchronous>, transform_indices = @transform_4, window_bounds = array<i64: 8, 72>}, {pipeline_mode = #tpu.pipeline_mode<synchronous>, transform_indices = @transform_5, window_bounds = array<i64: 8, 1>}, {transform_indices = @transform_6, window_bounds = array<i64: 32, 256>}]} {
    %c0 = arith.constant 0 : index
    %c0_0 = arith.constant 0 : index
    %0 = vector.load %arg1[%c0, %c0_0] : memref<8x256xf32, #tpu.memory_space<vmem>>, vector<8x256xf32>
    %c0_1 = arith.constant 0 : index
    %c0_2 = arith.constant 0 : index
    %1 = vector.load %arg2[%c0_1, %c0_2] : memref<72x256xf32, #tpu.memory_space<vmem>>, vector<72x256xf32>
    %c0_3 = arith.constant 0 : index
    %c0_4 = arith.constant 0 : index
    %2 = vector.load %arg3[%c0_3, %c0_4] : memref<16x72xf32, #tpu.memory_space<vmem>>, vector<16x72xf32>
    %c0_5 = arith.constant 0 : index
    %c0_6 = arith.constant 0 : index
    %3 = vector.load %arg4[%c0_5, %c0_6] : memref<16x1xf32, #tpu.memory_space<vmem>>, vector<16x1xf32>
    %c0_7 = arith.constant 0 : index
    %c0_8 = arith.constant 0 : index
    %4 = vector.load %arg5[%c0_7, %c0_8] : memref<8x72xf32, #tpu.memory_space<vmem>>, vector<8x72xf32>
    %c0_9 = arith.constant 0 : index
    %c0_10 = arith.constant 0 : index
    %5 = vector.load %arg6[%c0_9, %c0_10] : memref<8x1xf32, #tpu.memory_space<vmem>>, vector<8x1xf32>
    %c17_i32 = arith.constant 17 : i32
    %6 = tpu.dynamic_rotate %0 by %c17_i32 dim 1 : vector<8x256xf32>, i32 -> vector<8x256xf32>
    %c16_i32 = arith.constant 16 : i32
    %7 = tpu.dynamic_rotate %0 by %c16_i32 dim 1 : vector<8x256xf32>, i32 -> vector<8x256xf32>
    %c15_i32 = arith.constant 15 : i32
    %8 = tpu.dynamic_rotate %0 by %c15_i32 dim 1 : vector<8x256xf32>, i32 -> vector<8x256xf32>
    %c1_i32 = arith.constant 1 : i32
    %9 = tpu.dynamic_rotate %0 by %c1_i32 dim 1 : vector<8x256xf32>, i32 -> vector<8x256xf32>
    %c255_i32 = arith.constant 255 : i32
    %10 = tpu.dynamic_rotate %0 by %c255_i32 dim 1 : vector<8x256xf32>, i32 -> vector<8x256xf32>
    %c241_i32 = arith.constant 241 : i32
    %11 = tpu.dynamic_rotate %0 by %c241_i32 dim 1 : vector<8x256xf32>, i32 -> vector<8x256xf32>
    %c240_i32 = arith.constant 240 : i32
    %12 = tpu.dynamic_rotate %0 by %c240_i32 dim 1 : vector<8x256xf32>, i32 -> vector<8x256xf32>
    %c239_i32 = arith.constant 239 : i32
    %13 = tpu.dynamic_rotate %0 by %c239_i32 dim 1 : vector<8x256xf32>, i32 -> vector<8x256xf32>
    %14 = tpu.concatenate %6, %7, %8, %9, %0, %10, %11, %12, %13 in 0 : vector<8x256xf32>, vector<8x256xf32>, vector<8x256xf32>, vector<8x256xf32>, vector<8x256xf32>, vector<8x256xf32>, vector<8x256xf32>, vector<8x256xf32>, vector<8x256xf32> -> vector<72x256xf32>
    %15 = arith.mulf %14, %1 : vector<72x256xf32>
    %cst = arith.constant dense<0.000000e+00> : vector<16x256xf32>
    %16 = tpu.matmul %2, %15, %cst {dimension_numbers = #tpu.dot_dimension_numbers<[1], [0], [0], [1], [0, 0, 1, 1], [], []>} : vector<16x72xf32>, vector<72x256xf32>, vector<16x256xf32> -> vector<16x256xf32>
    %17 = vector.broadcast %3 : vector<16x1xf32> to vector<16x256xf32>
    %18 = arith.addf %16, %17 : vector<16x256xf32>
    %cst_11 = arith.constant 0.000000e+00 : f32
    %19 = vector.broadcast %cst_11 : f32 to vector<16x256xf32>
    %20 = arith.maximumf %18, %19 : vector<16x256xf32>
    %c0_12 = arith.constant 0 : index
    %c0_13 = arith.constant 0 : index
    %21 = vector.load %arg7[%c0_12, %c0_13] : memref<32x256xf32, #tpu.memory_space<vmem>>, vector<16x256xf32>
    tpu.vector_store %arg7[%c0_12, %c0_13], %20 {strides = array<i32>} : memref<32x256xf32, #tpu.memory_space<vmem>>, vector<16x256xf32>,
    %22 = vector.extract_strided_slice %20 {offsets = [8, 0], sizes = [8, 256], strides = [1, 1]} : vector<16x256xf32> to vector<8x256xf32>
    %c17_i32_14 = arith.constant 17 : i32
    %23 = tpu.dynamic_rotate %22 by %c17_i32_14 dim 1 : vector<8x256xf32>, i32 -> vector<8x256xf32>
    %c16_i32_15 = arith.constant 16 : i32
    %24 = tpu.dynamic_rotate %22 by %c16_i32_15 dim 1 : vector<8x256xf32>, i32 -> vector<8x256xf32>
    %c15_i32_16 = arith.constant 15 : i32
    %25 = tpu.dynamic_rotate %22 by %c15_i32_16 dim 1 : vector<8x256xf32>, i32 -> vector<8x256xf32>
    %c1_i32_17 = arith.constant 1 : i32
    %26 = tpu.dynamic_rotate %22 by %c1_i32_17 dim 1 : vector<8x256xf32>, i32 -> vector<8x256xf32>
    %c255_i32_18 = arith.constant 255 : i32
    %27 = tpu.dynamic_rotate %22 by %c255_i32_18 dim 1 : vector<8x256xf32>, i32 -> vector<8x256xf32>
    %c241_i32_19 = arith.constant 241 : i32
    %28 = tpu.dynamic_rotate %22 by %c241_i32_19 dim 1 : vector<8x256xf32>, i32 -> vector<8x256xf32>
    %c240_i32_20 = arith.constant 240 : i32
    %29 = tpu.dynamic_rotate %22 by %c240_i32_20 dim 1 : vector<8x256xf32>, i32 -> vector<8x256xf32>
    %c239_i32_21 = arith.constant 239 : i32
    %30 = tpu.dynamic_rotate %22 by %c239_i32_21 dim 1 : vector<8x256xf32>, i32 -> vector<8x256xf32>
    %31 = tpu.concatenate %23, %24, %25, %26, %22, %27, %28, %29, %30 in 0 : vector<8x256xf32>, vector<8x256xf32>, vector<8x256xf32>, vector<8x256xf32>, vector<8x256xf32>, vector<8x256xf32>, vector<8x256xf32>, vector<8x256xf32>, vector<8x256xf32> -> vector<72x256xf32>
    %32 = arith.mulf %31, %1 : vector<72x256xf32>
    %cst_22 = arith.constant dense<0.000000e+00> : vector<8x256xf32>
    %33 = tpu.matmul %4, %32, %cst_22 {dimension_numbers = #tpu.dot_dimension_numbers<[1], [0], [0], [1], [0, 0, 1, 1], [], []>} : vector<8x72xf32>, vector<72x256xf32>, vector<8x256xf32> -> vector<8x256xf32>
    %34 = vector.broadcast %5 : vector<8x1xf32> to vector<8x256xf32>
    %35 = arith.addf %33, %34 : vector<8x256xf32>
    %cst_23 = arith.constant 0.000000e+00 : f32
    %36 = vector.broadcast %cst_23 : f32 to vector<8x256xf32>
    %37 = arith.maximumf %35, %36 : vector<8x256xf32>
    %c16 = arith.constant 16 : index
    %c0_24 = arith.constant 0 : index
    %38 = vector.load %arg7[%c16, %c0_24] : memref<32x256xf32, #tpu.memory_space<vmem>>, vector<8x256xf32>
    tpu.vector_store %arg7[%c16, %c0_24], %37 {strides = array<i32>} : memref<32x256xf32, #tpu.memory_space<vmem>>, vector<8x256xf32>,
    %c17_i32_25 = arith.constant 17 : i32
    %39 = tpu.dynamic_rotate %37 by %c17_i32_25 dim 1 : vector<8x256xf32>, i32 -> vector<8x256xf32>
    %c16_i32_26 = arith.constant 16 : i32
    %40 = tpu.dynamic_rotate %37 by %c16_i32_26 dim 1 : vector<8x256xf32>, i32 -> vector<8x256xf32>
    %c15_i32_27 = arith.constant 15 : i32
    %41 = tpu.dynamic_rotate %37 by %c15_i32_27 dim 1 : vector<8x256xf32>, i32 -> vector<8x256xf32>
    %c1_i32_28 = arith.constant 1 : i32
    %42 = tpu.dynamic_rotate %37 by %c1_i32_28 dim 1 : vector<8x256xf32>, i32 -> vector<8x256xf32>
    %c255_i32_29 = arith.constant 255 : i32
    %43 = tpu.dynamic_rotate %37 by %c255_i32_29 dim 1 : vector<8x256xf32>, i32 -> vector<8x256xf32>
    %c241_i32_30 = arith.constant 241 : i32
    %44 = tpu.dynamic_rotate %37 by %c241_i32_30 dim 1 : vector<8x256xf32>, i32 -> vector<8x256xf32>
    %c240_i32_31 = arith.constant 240 : i32
    %45 = tpu.dynamic_rotate %37 by %c240_i32_31 dim 1 : vector<8x256xf32>, i32 -> vector<8x256xf32>
    %c239_i32_32 = arith.constant 239 : i32
    %46 = tpu.dynamic_rotate %37 by %c239_i32_32 dim 1 : vector<8x256xf32>, i32 -> vector<8x256xf32>
    %47 = tpu.concatenate %39, %40, %41, %42, %37, %43, %44, %45, %46 in 0 : vector<8x256xf32>, vector<8x256xf32>, vector<8x256xf32>, vector<8x256xf32>, vector<8x256xf32>, vector<8x256xf32>, vector<8x256xf32>, vector<8x256xf32>, vector<8x256xf32> -> vector<72x256xf32>
    %48 = arith.mulf %47, %1 : vector<72x256xf32>
    %cst_33 = arith.constant dense<0.000000e+00> : vector<8x256xf32>
    %49 = tpu.matmul %4, %48, %cst_33 {dimension_numbers = #tpu.dot_dimension_numbers<[1], [0], [0], [1], [0, 0, 1, 1], [], []>} : vector<8x72xf32>, vector<72x256xf32>, vector<8x256xf32> -> vector<8x256xf32>
    %50 = vector.broadcast %5 : vector<8x1xf32> to vector<8x256xf32>
    %51 = arith.addf %49, %50 : vector<8x256xf32>
    %cst_34 = arith.constant 0.000000e+00 : f32
    %52 = vector.broadcast %cst_34 : f32 to vector<8x256xf32>
    %53 = arith.maximumf %51, %52 : vector<8x256xf32>
    %c24 = arith.constant 24 : index
    %c0_35 = arith.constant 0 : index
    %54 = vector.load %arg7[%c24, %c0_35] : memref<32x256xf32, #tpu.memory_space<vmem>>, vector<8x256xf32>
    tpu.vector_store %arg7[%c24, %c0_35], %53 {strides = array<i32>} : memref<32x256xf32, #tpu.memory_space<vmem>>, vector<8x256xf32>,
    return
  }
  func.func @transform_0(%arg0: i32) -> (i32, i32) {
    %c0_i32 = arith.constant 0 : i32
    %c0_i32_0 = arith.constant 0 : i32
    return %c0_i32, %arg0 : i32, i32
  }
  func.func @transform_1(%arg0: i32) -> (i32, i32) {
    %c0_i32 = arith.constant 0 : i32
    %c0_i32_0 = arith.constant 0 : i32
    %c0_i32_1 = arith.constant 0 : i32
    return %c0_i32, %c0_i32_0 : i32, i32
  }
  func.func @transform_2(%arg0: i32) -> (i32, i32) {
    %c0_i32 = arith.constant 0 : i32
    %c0_i32_0 = arith.constant 0 : i32
    %c0_i32_1 = arith.constant 0 : i32
    return %c0_i32, %c0_i32_0 : i32, i32
  }
  func.func @transform_3(%arg0: i32) -> (i32, i32) {
    %c0_i32 = arith.constant 0 : i32
    %c0_i32_0 = arith.constant 0 : i32
    %c0_i32_1 = arith.constant 0 : i32
    return %c0_i32, %c0_i32_0 : i32, i32
  }
  func.func @transform_4(%arg0: i32) -> (i32, i32) {
    %c0_i32 = arith.constant 0 : i32
    %c0_i32_0 = arith.constant 0 : i32
    %c0_i32_1 = arith.constant 0 : i32
    return %c0_i32, %c0_i32_0 : i32, i32
  }
  func.func @transform_5(%arg0: i32) -> (i32, i32) {
    %c0_i32 = arith.constant 0 : i32
    %c0_i32_0 = arith.constant 0 : i32
    %c0_i32_1 = arith.constant 0 : i32
    return %c0_i32, %c0_i32_0 : i32, i32
  }
  func.func @transform_6(%arg0: i32) -> (i32, i32) {
    %c0_i32 = arith.constant 0 : i32
    %c0_i32_0 = arith.constant 0 : i32
    return %c0_i32, %arg0 : i32, i32
  }
}

</mosaic_0001>

<llo_original>
// kernel: tpu_custom_call.1
$region0: #{tpu_custom_call.1}
  #allocation0 [shape = 'u32[]', space=smem, size = 0x4, offset = 0x4, fixed_abs, tag = 'smem constant byte address 0x4 - core index']
  #allocation1 [shape = 'u32[144,128]{1,0:T(1,128)}', space=vmem, size = 0x12000, scoped, tag = 'internal scratch']
  %s0 = inlined_call_operand.hbm [shape: f32[8,512], index: 0, kind: input, shape index: {}]
  %s1 = inlined_call_operand.hbm [shape: f32[72,256], index: 1, kind: input, shape index: {}]
  %s2 = inlined_call_operand.vmem [shape: f32[16,72], index: 2, kind: input, shape index: {}]
  %s3 = inlined_call_operand.vmem [shape: f32[16,1], index: 3, kind: input, shape index: {}]
  %s4 = inlined_call_operand.vmem [shape: f32[8,72], index: 4, kind: input, shape index: {}]
  %s5 = inlined_call_operand.vmem [shape: f32[8,1], index: 5, kind: input, shape index: {}]
  %s6 = inlined_call_operand.hbm [shape: f32[32,512], index: 6, kind: output, shape index: {}]
  %s7 = sld [smem:[#allocation0]]
  $region65: #{tpu_custom_call.1} parent=0
    _
  %s9 = ssub.s32 1, %s7
  %s10 = scalar_select 0, %s9, %s7
  $region1: #{tpu_custom_call.1} parent=0
    #allocation2 [shape = 'u8[16384]{0}', space=vmem, size = 0x4000, scoped, tag = 'input window, operand 0']
    #allocation3 [shape = 's32[2]{0}', space=sflag, size = 0x8, scoped, tag = 'scoped memory for tpu_custom_call.1']
    #allocation4 [shape = 's32[2]{0}', space=sflag, size = 0x8, scoped, tag = 'scoped memory for tpu_custom_call.1']
    #allocation5 [shape = 'u8[73728]{0}', space=vmem, size = 0x12000, scoped, tag = 'input window, operand 1, single buffered']
    #allocation6 [shape = 's32[1]{0}', space=sflag, size = 0x4, scoped, tag = 'scoped memory for tpu_custom_call.1']
    #allocation7 [shape = 'u8[65536]{0}', space=vmem, size = 0x10000, scoped, tag = 'output window, operand 0']
    %11 = vsyncpa [#allocation3], 0
    %s12 = scalar_lea.sflag [#allocation3], 1
    %13 = vsyncpa %s12, 0
    %14 = vsyncpa [#allocation6], 0
    %15 = vsyncpa [#allocation4], 0
    %s16 = scalar_lea.sflag [#allocation4], 1
    %17 = vsyncpa %s16, 0
    loop: start=0, step=1, limit=4
    $region2: #{tpu_custom_call.1} parent=1 // loop_pre_header
      _
    $region3: #{tpu_custom_call.1} parent=1 // loop_header
      %s19 = sphi 0, %s23
      %p20 = scmp.ge.s32.totalorder %s19, 4
      %s29 = sphi 0, %s31
      %s32 = sphi 0, %s29
      %s33 = sphi 0, %s32
      %s49 = sphi 0, %s33
      %s53 = sphi 0, %s53
      %s55 = sphi 0, %s53
      %s56 = sphi 0, %s55
      %s70 = sphi 0, %s56
      %s74 = sphi 0, %s74
      %s76 = sphi 0, %s74
      %s77 = sphi 0, %s76
      %s91 = sphi 0, %s77
      %s95 = sphi 0, %s95
      %s97 = sphi 0, %s95
      %s98 = sphi 0, %s97
      %s112 = sphi 0, %s98
      %s116 = sphi 0, %s116
      %s118 = sphi 0, %s116
      %s119 = sphi 0, %s118
      %s133 = sphi 0, %s119
      %s137 = sphi 0, %s137
      %s139 = sphi 0, %s137
      %s140 = sphi 0, %s139
      %s154 = sphi 0, %s140
      %s160 = sphi 0, %s162
      %s163 = sphi 0, %s160
      %s164 = sphi 0, %s163
      %s180 = sphi 0, %s164
    $region4: #{tpu_custom_call.1} parent=1 // loop_header_branch
      %22 = sbr.rel (%p20) target = $region8
    $region5: #{tpu_custom_call.1} parent=1 // loop_body
      %s24 = ssub.s32 %s19, 1
      %s25 = ssub.s32 %s19, 2
      %s26 = sadd.s32 %s19, 1
      %s27 = ssub.s32 %s19, %s26
      %p28 = scmp.eq.s32.totalorder %s27, 0
      %s30 = sadd.s32 %s29, 1
      %s31 = scalar_select %p28, %s29, %s30
      %p34 = pneg %p28
      %p35 = scmp.eq.s32.totalorder %s19, 1
      %p36 = por %p34, %p35
      %p37 = scmp.ne.s32.totalorder %s29, %s32
      %p38 = scmp.eq.s32.totalorder %s19, 0
      %p39 = por %p37, %p38
      %p40 = scmp.ne.s32.totalorder %s29, %s32
      %p41 = scmp.eq.s32.totalorder %s24, 1
      %p42 = por %p40, %p41
      %p43 = scmp.ne.s32.totalorder %s32, %s33
      %p44 = scmp.eq.s32.totalorder %s24, 0
      %p45 = por %p43, %p44
      %p46 = scmp.ne.s32.totalorder %s32, %s33
      %p47 = scmp.eq.s32.totalorder %s25, 1
      %p48 = por %p46, %p47
      %p50 = scmp.ne.s32.totalorder %s33, %s49
      %p51 = scmp.eq.s32.totalorder %s25, 0
      %p52 = por %p50, %p51
      %s54 = sadd.s32 %s53, 1
      %p57 = scmp.eq.s32.totalorder %s19, 1
      %p58 = scmp.ne.s32.totalorder %s53, %s55
      %p59 = scmp.eq.s32.totalorder %s19, 0
      %p60 = por %p58, %p59
      %p61 = scmp.ne.s32.totalorder %s53, %s55
      %p62 = scmp.eq.s32.totalorder %s24, 1
      %p63 = por %p61, %p62
      %p64 = scmp.ne.s32.totalorder %s55, %s56
      %p65 = scmp.eq.s32.totalorder %s24, 0
      %p66 = por %p64, %p65
      %p67 = scmp.ne.s32.totalorder %s55, %s56
      %p68 = scmp.eq.s32.totalorder %s25, 1
      %p69 = por %p67, %p68
      %p71 = scmp.ne.s32.totalorder %s56, %s70
      %p72 = scmp.eq.s32.totalorder %s25, 0
      %p73 = por %p71, %p72
      %s75 = sadd.s32 %s74, 1
      %p78 = scmp.eq.s32.totalorder %s19, 1
      %p79 = scmp.ne.s32.totalorder %s74, %s76
      %p80 = scmp.eq.s32.totalorder %s19, 0
      %p81 = por %p79, %p80
      %p82 = scmp.ne.s32.totalorder %s74, %s76
      %p83 = scmp.eq.s32.totalorder %s24, 1
      %p84 = por %p82, %p83
      %p85 = scmp.ne.s32.totalorder %s76, %s77
      %p86 = scmp.eq.s32.totalorder %s24, 0
      %p87 = por %p85, %p86
      %p88 = scmp.ne.s32.totalorder %s76, %s77
      %p89 = scmp.eq.s32.totalorder %s25, 1
      %p90 = por %p88, %p89
      %p92 = scmp.ne.s32.totalorder %s77, %s91
      %p93 = scmp.eq.s32.totalorder %s25, 0
      %p94 = por %p92, %p93
      %s96 = sadd.s32 %s95, 1
      %p99 = scmp.eq.s32.totalorder %s19, 1
      %p100 = scmp.ne.s32.totalorder %s95, %s97
      %p101 = scmp.eq.s32.totalorder %s19, 0
      %p102 = por %p100, %p101
      %p103 = scmp.ne.s32.totalorder %s95, %s97
      %p104 = scmp.eq.s32.totalorder %s24, 1
      %p105 = por %p103, %p104
      %p106 = scmp.ne.s32.totalorder %s97, %s98
      %p107 = scmp.eq.s32.totalorder %s24, 0
      %p108 = por %p106, %p107
      %p109 = scmp.ne.s32.totalorder %s97, %s98
      %p110 = scmp.eq.s32.totalorder %s25, 1
      %p111 = por %p109, %p110
      %p113 = scmp.ne.s32.totalorder %s98, %s112
      %p114 = scmp.eq.s32.totalorder %s25, 0
      %p115 = por %p113, %p114
      %s117 = sadd.s32 %s116, 1
      %p120 = scmp.eq.s32.totalorder %s19, 1
      %p121 = scmp.ne.s32.totalorder %s116, %s118
      %p122 = scmp.eq.s32.totalorder %s19, 0
      %p123 = por %p121, %p122
      %p124 = scmp.ne.s32.totalorder %s116, %s118
      %p125 = scmp.eq.s32.totalorder %s24, 1
      %p126 = por %p124, %p125
      %p127 = scmp.ne.s32.totalorder %s118, %s119
      %p128 = scmp.eq.s32.totalorder %s24, 0
      %p129 = por %p127, %p128
      %p130 = scmp.ne.s32.totalorder %s118, %s119
      %p131 = scmp.eq.s32.totalorder %s25, 1
      %p132 = por %p130, %p131
      %p134 = scmp.ne.s32.totalorder %s119, %s133
      %p135 = scmp.eq.s32.totalorder %s25, 0
      %p136 = por %p134, %p135
      %s138 = sadd.s32 %s137, 1
      %p141 = scmp.eq.s32.totalorder %s19, 1
      %p142 = scmp.ne.s32.totalorder %s137, %s139
      %p143 = scmp.eq.s32.totalorder %s19, 0
      %p144 = por %p142, %p143
      %p145 = scmp.ne.s32.totalorder %s137, %s139
      %p146 = scmp.eq.s32.totalorder %s24, 1
      %p147 = por %p145, %p146
      %p148 = scmp.ne.s32.totalorder %s139, %s140
      %p149 = scmp.eq.s32.totalorder %s24, 0
      %p150 = por %p148, %p149
      %p151 = scmp.ne.s32.totalorder %s139, %s140
      %p152 = scmp.eq.s32.totalorder %s25, 1
      %p153 = por %p151, %p152
      %p155 = scmp.ne.s32.totalorder %s140, %s154
      %p156 = scmp.eq.s32.totalorder %s25, 0
      %p157 = por %p155, %p156
      %s158 = ssub.s32 %s19, %s26
      %p159 = scmp.eq.s32.totalorder %s158, 0
      %s161 = sadd.s32 %s160, 1
      %s162 = scalar_select %p159, %s160, %s161
      %p165 = pneg %p159
      %p166 = scmp.eq.s32.totalorder %s19, 1
      %p167 = por %p165, %p166
      %p168 = scmp.ne.s32.totalorder %s160, %s163
      %p169 = scmp.eq.s32.totalorder %s19, 0
      %p170 = por %p168, %p169
      %p171 = scmp.ne.s32.totalorder %s160, %s163
      %p172 = scmp.eq.s32.totalorder %s24, 1
      %p173 = por %p171, %p172
      %p174 = scmp.ne.s32.totalorder %s163, %s164
      %p175 = scmp.eq.s32.totalorder %s24, 0
      %p176 = por %p174, %p175
      %p177 = scmp.ne.s32.totalorder %s163, %s164
      %p178 = scmp.eq.s32.totalorder %s25, 1
      %p179 = por %p177, %p178
      %p181 = scmp.ne.s32.totalorder %s164, %s180
      %p182 = scmp.eq.s32.totalorder %s25, 0
      %p183 = por %p181, %p182
      %p184 = scmp.le.s32.totalorder 1, %s19
      %p185 = scmp.lt.s32.totalorder %s19, 3
      %p186 = pnand %p184, %p185
      %p187 = pneg %p186
      // Predicated region
      $region9: #{tpu_custom_call.1} parent=5 // pred_check
        _
      $region10: #{tpu_custom_call.1} parent=5 // pred_check_branch
        %189 = sbr.rel (%p186) target = $region12
      $region11: #{tpu_custom_call.1} parent=5 // pred_region
        %s190 = ssub.s32 %s19, 1
        // Predicated region
        $region13: #{tpu_custom_call.1} parent=11 // pred_check
          %p191 = pneg %p66
        $region14: #{tpu_custom_call.1} parent=11 // pred_check_branch
          %193 = sbr.rel (%p191) target = $region16
        $region15: #{tpu_custom_call.1} parent=11 // pred_region
          %s195 = ssub.s32 2304, 2304
          %196 = vsyncadd [#allocation6], %s195
          %s197 = sshll.u32 [#allocation5], 4
          %s198 = int_to_ptr.vmem [resolvable:$true] %s197
          %203 = dma.hbm_to_vmem [thread:$0]  %s1, 2304, %s198, [#allocation6], 256, 256, 16
        $region16: #{tpu_custom_call.1} parent=11 // pred_fallthru
          _
        // Predicated region
        $region17: #{tpu_custom_call.1} parent=11 // pred_check
          %p204 = pneg %p87
        $region18: #{tpu_custom_call.1} parent=11 // pred_check_branch
          %206 = sbr.rel (%p204) target = $region20
        $region19: #{tpu_custom_call.1} parent=11 // pred_region
          _
        $region20: #{tpu_custom_call.1} parent=11 // pred_fallthru
          _
        // Predicated region
        $region21: #{tpu_custom_call.1} parent=11 // pred_check
          %p207 = pneg %p108
        $region22: #{tpu_custom_call.1} parent=11 // pred_check_branch
          %209 = sbr.rel (%p207) target = $region24
        $region23: #{tpu_custom_call.1} parent=11 // pred_region
          _
        $region24: #{tpu_custom_call.1} parent=11 // pred_fallthru
          _
        // Predicated region
        $region25: #{tpu_custom_call.1} parent=11 // pred_check
          %p210 = pneg %p129
        $region26: #{tpu_custom_call.1} parent=11 // pred_check_branch
          %212 = sbr.rel (%p210) target = $region28
        $region27: #{tpu_custom_call.1} parent=11 // pred_region
          _
        $region28: #{tpu_custom_call.1} parent=11 // pred_fallthru
          _
        // Predicated region
        $region29: #{tpu_custom_call.1} parent=11 // pred_check
          %p213 = pneg %p150
        $region30: #{tpu_custom_call.1} parent=11 // pred_check_branch
          %215 = sbr.rel (%p213) target = $region32
        $region31: #{tpu_custom_call.1} parent=11 // pred_region
          _
        $region32: #{tpu_custom_call.1} parent=11 // pred_fallthru
          _
      $region12: #{tpu_custom_call.1} parent=5 // pred_fallthru
        _
      %p216 = scmp.lt.s32.totalorder %s19, 2
      // Predicated region
      $region33: #{tpu_custom_call.1} parent=5 // pred_check
        %p217 = pneg %p216
      $region34: #{tpu_custom_call.1} parent=5 // pred_check_branch
        %219 = sbr.rel (%p217) target = $region36
      $region35: #{tpu_custom_call.1} parent=5 // pred_region
        // Predicated region
        $region37: #{tpu_custom_call.1} parent=35 // pred_check
          %p220 = pneg %p39
        $region38: #{tpu_custom_call.1} parent=35 // pred_check_branch
          %222 = sbr.rel (%p220) target = $region40
        $region39: #{tpu_custom_call.1} parent=35 // pred_region
          %s223 = sand.u32 %s29, 1
          %s224 = scalar_lea.sflag [#allocation3], %s223
          %s225 = sand.u32 %s29, 1
          %s226 = smul.addr %s225, 16
          %s227 = scalar_lea.vmem [#allocation2], %s226
          %s228 = smul.u32 2, %s19
          %s230 = ssub.s32 256, 256
          %231 = vsyncadd %s224, %s230
          %s232 = smul.addr %s228, 128
          %s233 = scalar_lea.hbm %s0, %s232
          %s235 = sshll.u32 %s227, 4
          %s236 = int_to_ptr.vmem [resolvable:$true] %s235
          %238 = dma.hbm_to_vmem [thread:$0]  %s233, 256, %s236, %s224
        $region40: #{tpu_custom_call.1} parent=35 // pred_fallthru
          _
      $region36: #{tpu_custom_call.1} parent=5 // pred_fallthru
        _
      %p239 = scmp.le.s32.totalorder 1, %s19
      %p240 = scmp.lt.s32.totalorder %s19, 3
      %p241 = pnand %p239, %p240
      %p242 = pneg %p241
      // Predicated region
      $region41: #{tpu_custom_call.1} parent=5 // pred_check
        _
      $region42: #{tpu_custom_call.1} parent=5 // pred_check_branch
        %244 = sbr.rel (%p241) target = $region44
      $region43: #{tpu_custom_call.1} parent=5 // pred_region
        %s245 = ssub.s32 %s19, 1
        %s246 = sand.u32 %s32, 1
        %s247 = scalar_lea.sflag [#allocation3], %s246
        %s248 = sand.u32 %s32, 1
        %s249 = smul.addr %s248, 16
        %s250 = scalar_lea.vmem [#allocation2], %s249
        // Predicated region
        $region45: #{tpu_custom_call.1} parent=43 // pred_check
          %p251 = pneg %p45
        $region46: #{tpu_custom_call.1} parent=43 // pred_check_branch
          %253 = sbr.rel (%p251) target = $region48
        $region47: #{tpu_custom_call.1} parent=43 // pred_region
          %254 = dma.done %s247, 256
        $region48: #{tpu_custom_call.1} parent=43 // pred_fallthru
          _
        // Predicated region
        $region49: #{tpu_custom_call.1} parent=43 // pred_check
          %p255 = pneg %p66
        $region50: #{tpu_custom_call.1} parent=43 // pred_check_branch
          %257 = sbr.rel (%p255) target = $region52
        $region51: #{tpu_custom_call.1} parent=43 // pred_region
          %258 = dma.done [#allocation6], 2304
        $region52: #{tpu_custom_call.1} parent=43 // pred_fallthru
          _
        %s259 = sand.u32 %s32, 1
        %s260 = scalar_lea.sflag [#allocation3], %s259
        %s261 = sand.u32 %s32, 1
        %s262 = smul.addr %s261, 16
        %s263 = scalar_lea.vmem [#allocation2], %s262
        %p264 = pneg %p45
        %p265 = pneg %p42
        %p266 = pneg %p66
        %p267 = pneg %p63
        %p268 = pneg %p87
        %p269 = pneg %p84
        %p270 = pneg %p108
        %p271 = pneg %p105
        %p272 = pneg %p129
        %p273 = pneg %p126
        %p274 = pneg %p150
        %p275 = pneg %p147
        %p276 = pneg %p176
        %p277 = pneg %p173
        %s278 = sand.u32 %s163, 1
        %s279 = scalar_lea.sflag [#allocation4], %s278
        %s280 = sand.u32 %s163, 1
        %s281 = smul.addr %s280, 64
        %s282 = scalar_lea.vmem [#allocation7], %s281
        %s283 = smul.u32 2, %s24
        %s284 = smul.u32 2, %s24
        %v285 = vld [vmem:[%s250] sm:$0xff]
        %v286 = vld [vmem:[%s250 + $0x8] sm:$0xff]
        %v287 = vld [vmem:[#allocation5] sm:$0xff]
        %v288 = vld [vmem:[#allocation5 + $0x8] sm:$0xff]
        %v289 = vld [vmem:[#allocation5 + $0x10] sm:$0xff]
        %v290 = vld [vmem:[#allocation5 + $0x18] sm:$0xff]
        %v291 = vld [vmem:[#allocation5 + $0x20] sm:$0xff]
        %v292 = vld [vmem:[#allocation5 + $0x28] sm:$0xff]
        %v293 = vld [vmem:[#allocation5 + $0x30] sm:$0xff]
        %v294 = vld [vmem:[#allocation5 + $0x38] sm:$0xff]
        %v295 = vld [vmem:[#allocation5 + $0x40] sm:$0xff]
        %v296 = vld [vmem:[#allocation5 + $0x48] sm:$0xff]
        %v297 = vld [vmem:[#allocation5 + $0x50] sm:$0xff]
        %v298 = vld [vmem:[#allocation5 + $0x58] sm:$0xff]
        %v299 = vld [vmem:[#allocation5 + $0x60] sm:$0xff]
        %v300 = vld [vmem:[#allocation5 + $0x68] sm:$0xff]
        %v301 = vld [vmem:[#allocation5 + $0x70] sm:$0xff]
        %v302 = vld [vmem:[#allocation5 + $0x78] sm:$0xff]
        %v303 = vld [vmem:[#allocation5 + $0x80] sm:$0xff]
        %v304 = vld [vmem:[#allocation5 + $0x88] sm:$0xff]
        %v305 = vld [vmem:[%s2] sm:$0xff]
        %v306 = vld [vmem:[%s2 + $0x8] sm:$0xff]
        %v307 = vld [vmem:[%s3] sm:$0xff]
        %v308 = vld [vmem:[%s3 + $0x8] sm:$0xff]
        %v309 = vld [vmem:[%s4] sm:$0xff]
        %v310 = vld [vmem:[%s5] sm:$0xff]
        %311 = vrot.lane.b32.xlu0 %v285, 17
        %v312 = vpop.permute.xlu0 %311
        %313 = vrot.lane.b32.xlu0 %v286, 17
        %v314 = vpop.permute.xlu0 %313
        %v315 = vlaneseq
        %v316 = vand.u32 %v315, 127
        %vm317 = vcmp.lt.s32.totalorder %v316, 17
        %v318 = vsel %vm317, %v312, %v314
        %v319 = vsel %vm317, %v314, %v312
        %320 = vrot.lane.b32.xlu0 %v285, 16
        %v321 = vpop.permute.xlu0 %320
        %322 = vrot.lane.b32.xlu0 %v286, 16
        %v323 = vpop.permute.xlu0 %322
        %vm324 = vcmp.lt.s32.totalorder %v316, 16
        %v325 = vsel %vm324, %v321, %v323
        %v326 = vsel %vm324, %v323, %v321
        %327 = vrot.lane.b32.xlu0 %v285, 15
        %v328 = vpop.permute.xlu0 %327
        %329 = vrot.lane.b32.xlu0 %v286, 15
        %v330 = vpop.permute.xlu0 %329
        %vm331 = vcmp.lt.s32.totalorder %v316, 15
        %v332 = vsel %vm331, %v328, %v330
        %v333 = vsel %vm331, %v330, %v328
        %334 = vrot.lane.b32.xlu0 %v285, 1
        %v335 = vpop.permute.xlu0 %334
        %336 = vrot.lane.b32.xlu0 %v286, 1
        %v337 = vpop.permute.xlu0 %336
        %vm338 = vcmp.lt.s32.totalorder %v316, 1
        %v339 = vsel %vm338, %v335, %v337
        %v340 = vsel %vm338, %v337, %v335
        %341 = vrot.lane.b32.xlu0 %v285, 127
        %v342 = vpop.permute.xlu0 %341
        %343 = vrot.lane.b32.xlu0 %v286, 127
        %v344 = vpop.permute.xlu0 %343
        %vm345 = vcmp.lt.s32.totalorder %v316, 127
        %v346 = vsel %vm345, %v342, %v344
        %v347 = vsel %vm345, %v344, %v342
        %348 = vrot.lane.b32.xlu0 %v285, 113
        %v349 = vpop.permute.xlu0 %348
        %350 = vrot.lane.b32.xlu0 %v286, 113
        %v351 = vpop.permute.xlu0 %350
        %vm352 = vcmp.lt.s32.totalorder %v316, 113
        %v353 = vsel %vm352, %v349, %v351
        %v354 = vsel %vm352, %v351, %v349
        %355 = vrot.lane.b32.xlu0 %v285, 112
        %v356 = vpop.permute.xlu0 %355
        %357 = vrot.lane.b32.xlu0 %v286, 112
        %v358 = vpop.permute.xlu0 %357
        %vm359 = vcmp.lt.s32.totalorder %v316, 112
        %v360 = vsel %vm359, %v356, %v358
        %v361 = vsel %vm359, %v358, %v356
        %362 = vrot.lane.b32.xlu0 %v285, 111
        %v363 = vpop.permute.xlu0 %362
        %364 = vrot.lane.b32.xlu0 %v286, 111
        %v365 = vpop.permute.xlu0 %364
        %vm366 = vcmp.lt.s32.totalorder %v316, 111
        %v367 = vsel %vm366, %v363, %v365
        %v368 = vsel %vm366, %v365, %v363
        %v369 = vmul.f32 %v319, %v287
        %v370 = vmul.f32 %v318, %v288
        %v371 = vmul.f32 %v326, %v289
        %v372 = vmul.f32 %v325, %v290
        %v373 = vmul.f32 %v333, %v291
        %v374 = vmul.f32 %v332, %v292
        %v375 = vmul.f32 %v340, %v293
        %v376 = vmul.f32 %v339, %v294
        %v377 = vmul.f32 %v285, %v295
        %v378 = vmul.f32 %v286, %v296
        %v379 = vmul.f32 %v346, %v297
        %v380 = vmul.f32 %v347, %v298
        %v381 = vmul.f32 %v353, %v299
        %v382 = vmul.f32 %v354, %v300
        %v383 = vmul.f32 %v360, %v301
        %v384 = vmul.f32 %v361, %v302
        %v385 = vmul.f32 %v367, %v303
        %v386 = vmul.f32 %v368, %v304
        %388 = vset.pattern.permute.xlu0 0
        %389 = vperm.xlu0 %388, %v307
        %v390 = vpop.permute.xlu0 %389
        %393 = vset.pattern.permute.xlu0 0
        %394 = vperm.xlu0 %393, %v308
        %v395 = vpop.permute.xlu0 %394
        %vm397 = vcmask 588800
        %v399 = vsel %vm397, %v305, 0
        %v402 = vsel %vm397, %v306, 0
        %404 = vmatprep.subr.mxu0 0.0
        %405 = vmatpush1.msra.mxu0 0.0
        %406 = vmatprep.subr.mxu0 0.0
        %407 = vmatpush1.msra.mxu0 0.0
        %408 = vmatprep.subr.mxu0 0.0
        %409 = vmatpush1.msra.mxu0 0.0
        %410 = vmatprep.subr.mxu0 0.0
        %411 = vmatpush1.msra.mxu0 0.0
        %412 = vmatprep.subr.mxu0 0.0
        %413 = vmatpush1.msra.mxu0 0.0
        %414 = vmatprep.subr.mxu0 0.0
        %415 = vmatpush1.msra.mxu0 0.0
        %416 = vmatprep.subr.mxu0 0.0
        %417 = vmatpush1.msra.mxu0 0.0
        %418 = vmatprep.subr.mxu0 %v386
        %419 = vmatpush1.msra.mxu0 %v385
        %420 = vmatprep.subr.mxu0 %v384
        %421 = vmatpush1.msra.mxu0 %v383
        %422 = vmatprep.subr.mxu0 %v382
        %423 = vmatpush1.msra.mxu0 %v381
        %424 = vmatprep.subr.mxu0 %v380
        %425 = vmatpush1.msra.mxu0 %v379
        %426 = vmatprep.subr.mxu0 %v378
        %427 = vmatpush1.msra.mxu0 %v377
        %428 = vmatprep.subr.mxu0 %v376
        %429 = vmatpush1.msra.mxu0 %v375
        %430 = vmatprep.subr.mxu0 %v374
        %431 = vmatpush1.msra.mxu0 %v373
        %432 = vmatprep.subr.mxu0 %v372
        %433 = vmatpush1.msra.mxu0 %v371
        %434 = vmatprep.subr.mxu0 %v370
        %435 = vmatpush1.msra.mxu0 %v369
        %436 = vmatprep.subr.mxu0 0.0
        %437 = vmatpush2.msra.mxu0 0.0
        %438 = vmatprep.subr.mxu0 0.0
        %439 = vmatpush2.msra.mxu0 0.0
        %440 = vmatprep.subr.mxu0 0.0
        %441 = vmatpush2.msra.mxu0 0.0
        %442 = vmatprep.subr.mxu0 0.0
        %443 = vmatpush2.msra.mxu0 0.0
        %444 = vmatprep.subr.mxu0 0.0
        %445 = vmatpush2.msra.mxu0 0.0
        %446 = vmatprep.subr.mxu0 0.0
        %447 = vmatpush2.msra.mxu0 0.0
        %448 = vmatprep.subr.mxu0 0.0
        %449 = vmatpush2.msra.mxu0 0.0
        %450 = vmatprep.subr.mxu0 0.0
        %451 = vmatpush2.msra.mxu0 0.0
        %452 = vmatprep.subr.mxu0 0.0
        %453 = vmatpush2.msra.mxu0 0.0
        %454 = vmatprep.subr.mxu0 0.0
        %455 = vmatpush2.msra.mxu0 0.0
        %456 = vmatprep.subr.mxu0 0.0
        %457 = vmatpush2.msra.mxu0 0.0
        %458 = vmatprep.subr.mxu0 0.0
        %459 = vmatpush2.msra.mxu0 0.0
        %460 = vmatprep.subr.mxu0 0.0
        %461 = vmatpush2.msra.mxu0 0.0
        %462 = vmatprep.subr.mxu0 0.0
        %463 = vmatpush2.msra.mxu0 0.0
        %464 = vmatprep.subr.mxu0 0.0
        %465 = vmatpush2.msra.mxu0 0.0
        %466 = vmatprep.subr.mxu0 0.0
        %467 = vmatpush2.msra.mxu0 0.0
        %468 = vmatprep.mubr.f32.mxu0 0.0
        %469 = vmatmul.mubr.f32.gmra.mxu0 %v399
        %v470 = vpop.f32.mrf.mxu0
        %v471 = vadd.f32 %v390, %v470
        %v472 = vpop.f32.mrf.mxu0
        %v473 = vadd.f32 %v390, %v472
        %474 = vmatprep.mubr.f32.mxu0 0.0
        %475 = vmatmul.mubr.f32.gmra.mxu0 %v402
        %v476 = vpop.f32.mrf.mxu0
        %v477 = vadd.f32 %v395, %v476
        %v478 = vpop.f32.mrf.mxu0
        %v479 = vadd.f32 %v395, %v478
        %480 = vdwg.mxu0
        %v481 = vmax.f32 %v471, 0.0
        %v482 = vmax.f32 %v473, 0.0
        %v483 = vmax.f32 %v477, 0.0
        %v484 = vmax.f32 %v479, 0.0
        %485 = vst [vmem:[%s282] sm:$0xff] %v481
        %486 = vst [vmem:[%s282 + $0x8] sm:$0xff] %v482
        %487 = vst [vmem:[%s282 + $0x10] sm:$0xff] %v483
        %488 = vst [vmem:[%s282 + $0x18] sm:$0xff] %v484
        %489 = vrot.lane.b32.xlu0 %v483, 17
        %v490 = vpop.permute.xlu0 %489
        %491 = vrot.lane.b32.xlu0 %v484, 17
        %v492 = vpop.permute.xlu0 %491
        %v493 = vsel %vm317, %v490, %v492
        %v494 = vsel %vm317, %v492, %v490
        %495 = vrot.lane.b32.xlu0 %v483, 16
        %v496 = vpop.permute.xlu0 %495
        %497 = vrot.lane.b32.xlu0 %v484, 16
        %v498 = vpop.permute.xlu0 %497
        %v499 = vsel %vm324, %v496, %v498
        %v500 = vsel %vm324, %v498, %v496
        %501 = vrot.lane.b32.xlu0 %v483, 15
        %v502 = vpop.permute.xlu0 %501
        %503 = vrot.lane.b32.xlu0 %v484, 15
        %v504 = vpop.permute.xlu0 %503
        %v505 = vsel %vm331, %v502, %v504
        %v506 = vsel %vm331, %v504, %v502
        %507 = vrot.lane.b32.xlu0 %v483, 1
        %v508 = vpop.permute.xlu0 %507
        %509 = vrot.lane.b32.xlu0 %v484, 1
        %v510 = vpop.permute.xlu0 %509
        %v511 = vsel %vm338, %v508, %v510
        %v512 = vsel %vm338, %v510, %v508
        %513 = vrot.lane.b32.xlu0 %v483, 127
        %v514 = vpop.permute.xlu0 %513
        %515 = vrot.lane.b32.xlu0 %v484, 127
        %v516 = vpop.permute.xlu0 %515
        %v517 = vsel %vm345, %v514, %v516
        %v518 = vsel %vm345, %v516, %v514
        %519 = vrot.lane.b32.xlu0 %v483, 113
        %v520 = vpop.permute.xlu0 %519
        %521 = vrot.lane.b32.xlu0 %v484, 113
        %v522 = vpop.permute.xlu0 %521
        %v523 = vsel %vm352, %v520, %v522
        %v524 = vsel %vm352, %v522, %v520
        %525 = vrot.lane.b32.xlu0 %v483, 112
        %v526 = vpop.permute.xlu0 %525
        %527 = vrot.lane.b32.xlu0 %v484, 112
        %v528 = vpop.permute.xlu0 %527
        %v529 = vsel %vm359, %v526, %v528
        %v530 = vsel %vm359, %v528, %v526
        %531 = vrot.lane.b32.xlu0 %v483, 111
        %v532 = vpop.permute.xlu0 %531
        %533 = vrot.lane.b32.xlu0 %v484, 111
        %v534 = vpop.permute.xlu0 %533
        %v535 = vsel %vm366, %v532, %v534
        %v536 = vsel %vm366, %v534, %v532
        %v537 = vmul.f32 %v494, %v287
        %v538 = vmul.f32 %v493, %v288
        %v539 = vmul.f32 %v500, %v289
        %v540 = vmul.f32 %v499, %v290
        %v541 = vmul.f32 %v506, %v291
        %v542 = vmul.f32 %v505, %v292
        %v543 = vmul.f32 %v512, %v293
        %v544 = vmul.f32 %v511, %v294
        %v545 = vmul.f32 %v483, %v295
        %v546 = vmul.f32 %v484, %v296
        %v547 = vmul.f32 %v517, %v297
        %v548 = vmul.f32 %v518, %v298
        %v549 = vmul.f32 %v523, %v299
        %v550 = vmul.f32 %v524, %v300
        %v551 = vmul.f32 %v529, %v301
        %v552 = vmul.f32 %v530, %v302
        %v553 = vmul.f32 %v535, %v303
        %v554 = vmul.f32 %v536, %v304
        %556 = vset.pattern.permute.xlu0 0
        %557 = vperm.xlu0 %556, %v310
        %v558 = vpop.permute.xlu0 %557
        %v561 = vsel %vm397, %v309, 0
        %563 = vmatprep.subr.mxu0 0.0
        %564 = vmatpush1.msra.mxu0 0.0
        %565 = vmatprep.subr.mxu0 0.0
        %566 = vmatpush1.msra.mxu0 0.0
        %567 = vmatprep.subr.mxu0 0.0
        %568 = vmatpush1.msra.mxu0 0.0
        %569 = vmatprep.subr.mxu0 0.0
        %570 = vmatpush1.msra.mxu0 0.0
        %571 = vmatprep.subr.mxu0 0.0
        %572 = vmatpush1.msra.mxu0 0.0
        %573 = vmatprep.subr.mxu0 0.0
        %574 = vmatpush1.msra.mxu0 0.0
        %575 = vmatprep.subr.mxu0 0.0
        %576 = vmatpush1.msra.mxu0 0.0
        %577 = vmatprep.subr.mxu0 %v554
        %578 = vmatpush1.msra.mxu0 %v553
        %579 = vmatprep.subr.mxu0 %v552
        %580 = vmatpush1.msra.mxu0 %v551
        %581 = vmatprep.subr.mxu0 %v550
        %582 = vmatpush1.msra.mxu0 %v549
        %583 = vmatprep.subr.mxu0 %v548
        %584 = vmatpush1.msra.mxu0 %v547
        %585 = vmatprep.subr.mxu0 %v546
        %586 = vmatpush1.msra.mxu0 %v545
        %587 = vmatprep.subr.mxu0 %v544
        %588 = vmatpush1.msra.mxu0 %v543
        %589 = vmatprep.subr.mxu0 %v542
        %590 = vmatpush1.msra.mxu0 %v541
        %591 = vmatprep.subr.mxu0 %v540
        %592 = vmatpush1.msra.mxu0 %v539
        %593 = vmatprep.subr.mxu0 %v538
        %594 = vmatpush1.msra.mxu0 %v537
        %595 = vmatprep.subr.mxu0 0.0
        %596 = vmatpush2.msra.mxu0 0.0
        %597 = vmatprep.subr.mxu0 0.0
        %598 = vmatpush2.msra.mxu0 0.0
        %599 = vmatprep.subr.mxu0 0.0
        %600 = vmatpush2.msra.mxu0 0.0
        %601 = vmatprep.subr.mxu0 0.0
        %602 = vmatpush2.msra.mxu0 0.0
        %603 = vmatprep.subr.mxu0 0.0
        %604 = vmatpush2.msra.mxu0 0.0
        %605 = vmatprep.subr.mxu0 0.0
        %606 = vmatpush2.msra.mxu0 0.0
        %607 = vmatprep.subr.mxu0 0.0
        %608 = vmatpush2.msra.mxu0 0.0
        %609 = vmatprep.subr.mxu0 0.0
        %610 = vmatpush2.msra.mxu0 0.0
        %611 = vmatprep.subr.mxu0 0.0
        %612 = vmatpush2.msra.mxu0 0.0
        %613 = vmatprep.subr.mxu0 0.0
        %614 = vmatpush2.msra.mxu0 0.0
        %615 = vmatprep.subr.mxu0 0.0
        %616 = vmatpush2.msra.mxu0 0.0
        %617 = vmatprep.subr.mxu0 0.0
        %618 = vmatpush2.msra.mxu0 0.0
        %619 = vmatprep.subr.mxu0 0.0
        %620 = vmatpush2.msra.mxu0 0.0
        %621 = vmatprep.subr.mxu0 0.0
        %622 = vmatpush2.msra.mxu0 0.0
        %623 = vmatprep.subr.mxu0 0.0
        %624 = vmatpush2.msra.mxu0 0.0
        %625 = vmatprep.subr.mxu0 0.0
        %626 = vmatpush2.msra.mxu0 0.0
        %627 = vmatprep.mubr.f32.mxu0 0.0
        %628 = vmatmul.mubr.f32.gmra.mxu0 %v561
        %v629 = vpop.f32.mrf.mxu0
        %v630 = vadd.f32 %v558, %v629
        %v631 = vpop.f32.mrf.mxu0
        %v632 = vadd.f32 %v558, %v631
        %633 = vdwg.mxu0
        %v634 = vmax.f32 %v630, 0.0
        %v635 = vmax.f32 %v632, 0.0
        %636 = vst [vmem:[%s282 + $0x20] sm:$0xff] %v634
        %637 = vst [vmem:[%s282 + $0x28] sm:$0xff] %v635
        %638 = vrot.lane.b32.xlu0 %v634, 17
        %v639 = vpop.permute.xlu0 %638
        %640 = vrot.lane.b32.xlu0 %v635, 17
        %v641 = vpop.permute.xlu0 %640
        %v642 = vsel %vm317, %v639, %v641
        %v643 = vsel %vm317, %v641, %v639
        %644 = vrot.lane.b32.xlu0 %v634, 16
        %v645 = vpop.permute.xlu0 %644
        %646 = vrot.lane.b32.xlu0 %v635, 16
        %v647 = vpop.permute.xlu0 %646
        %v648 = vsel %vm324, %v645, %v647
        %v649 = vsel %vm324, %v647, %v645
        %650 = vrot.lane.b32.xlu0 %v634, 15
        %v651 = vpop.permute.xlu0 %650
        %652 = vrot.lane.b32.xlu0 %v635, 15
        %v653 = vpop.permute.xlu0 %652
        %v654 = vsel %vm331, %v651, %v653
        %v655 = vsel %vm331, %v653, %v651
        %656 = vrot.lane.b32.xlu0 %v634, 1
        %v657 = vpop.permute.xlu0 %656
        %658 = vrot.lane.b32.xlu0 %v635, 1
        %v659 = vpop.permute.xlu0 %658
        %v660 = vsel %vm338, %v657, %v659
        %v661 = vsel %vm338, %v659, %v657
        %662 = vrot.lane.b32.xlu0 %v634, 127
        %v663 = vpop.permute.xlu0 %662
        %664 = vrot.lane.b32.xlu0 %v635, 127
        %v665 = vpop.permute.xlu0 %664
        %v666 = vsel %vm345, %v663, %v665
        %v667 = vsel %vm345, %v665, %v663
        %668 = vrot.lane.b32.xlu0 %v634, 113
        %v669 = vpop.permute.xlu0 %668
        %670 = vrot.lane.b32.xlu0 %v635, 113
        %v671 = vpop.permute.xlu0 %670
        %v672 = vsel %vm352, %v669, %v671
        %v673 = vsel %vm352, %v671, %v669
        %674 = vrot.lane.b32.xlu0 %v634, 112
        %v675 = vpop.permute.xlu0 %674
        %676 = vrot.lane.b32.xlu0 %v635, 112
        %v677 = vpop.permute.xlu0 %676
        %v678 = vsel %vm359, %v675, %v677
        %v679 = vsel %vm359, %v677, %v675
        %680 = vrot.lane.b32.xlu0 %v634, 111
        %v681 = vpop.permute.xlu0 %680
        %682 = vrot.lane.b32.xlu0 %v635, 111
        %v683 = vpop.permute.xlu0 %682
        %v684 = vsel %vm366, %v681, %v683
        %v685 = vsel %vm366, %v683, %v681
        %v686 = vmul.f32 %v643, %v287
        %v687 = vmul.f32 %v642, %v288
        %v688 = vmul.f32 %v649, %v289
        %v689 = vmul.f32 %v648, %v290
        %v690 = vmul.f32 %v655, %v291
        %v691 = vmul.f32 %v654, %v292
        %v692 = vmul.f32 %v661, %v293
        %v693 = vmul.f32 %v660, %v294
        %v694 = vmul.f32 %v634, %v295
        %v695 = vmul.f32 %v635, %v296
        %v696 = vmul.f32 %v666, %v297
        %v697 = vmul.f32 %v667, %v298
        %v698 = vmul.f32 %v672, %v299
        %v699 = vmul.f32 %v673, %v300
        %v700 = vmul.f32 %v678, %v301
        %v701 = vmul.f32 %v679, %v302
        %v702 = vmul.f32 %v684, %v303
        %v703 = vmul.f32 %v685, %v304
        %704 = vmatprep.subr.mxu0 0.0
        %705 = vmatpush1.msra.mxu0 0.0
        %706 = vmatprep.subr.mxu0 0.0
        %707 = vmatpush1.msra.mxu0 0.0
        %708 = vmatprep.subr.mxu0 0.0
        %709 = vmatpush1.msra.mxu0 0.0
        %710 = vmatprep.subr.mxu0 0.0
        %711 = vmatpush1.msra.mxu0 0.0
        %712 = vmatprep.subr.mxu0 0.0
        %713 = vmatpush1.msra.mxu0 0.0
        %714 = vmatprep.subr.mxu0 0.0
        %715 = vmatpush1.msra.mxu0 0.0
        %716 = vmatprep.subr.mxu0 0.0
        %717 = vmatpush1.msra.mxu0 0.0
        %718 = vmatprep.subr.mxu0 %v703
        %719 = vmatpush1.msra.mxu0 %v702
        %720 = vmatprep.subr.mxu0 %v701
        %721 = vmatpush1.msra.mxu0 %v700
        %722 = vmatprep.subr.mxu0 %v699
        %723 = vmatpush1.msra.mxu0 %v698
        %724 = vmatprep.subr.mxu0 %v697
        %725 = vmatpush1.msra.mxu0 %v696
        %726 = vmatprep.subr.mxu0 %v695
        %727 = vmatpush1.msra.mxu0 %v694
        %728 = vmatprep.subr.mxu0 %v693
        %729 = vmatpush1.msra.mxu0 %v692
        %730 = vmatprep.subr.mxu0 %v691
        %731 = vmatpush1.msra.mxu0 %v690
        %732 = vmatprep.subr.mxu0 %v689
        %733 = vmatpush1.msra.mxu0 %v688
        %734 = vmatprep.subr.mxu0 %v687
        %735 = vmatpush1.msra.mxu0 %v686
        %736 = vmatprep.subr.mxu0 0.0
        %737 = vmatpush2.msra.mxu0 0.0
        %738 = vmatprep.subr.mxu0 0.0
        %739 = vmatpush2.msra.mxu0 0.0
        %740 = vmatprep.subr.mxu0 0.0
        %741 = vmatpush2.msra.mxu0 0.0
        %742 = vmatprep.subr.mxu0 0.0
        %743 = vmatpush2.msra.mxu0 0.0
        %744 = vmatprep.subr.mxu0 0.0
        %745 = vmatpush2.msra.mxu0 0.0
        %746 = vmatprep.subr.mxu0 0.0
        %747 = vmatpush2.msra.mxu0 0.0
        %748 = vmatprep.subr.mxu0 0.0
        %749 = vmatpush2.msra.mxu0 0.0
        %750 = vmatprep.subr.mxu0 0.0
        %751 = vmatpush2.msra.mxu0 0.0
        %752 = vmatprep.subr.mxu0 0.0
        %753 = vmatpush2.msra.mxu0 0.0
        %754 = vmatprep.subr.mxu0 0.0
        %755 = vmatpush2.msra.mxu0 0.0
        %756 = vmatprep.subr.mxu0 0.0
        %757 = vmatpush2.msra.mxu0 0.0
        %758 = vmatprep.subr.mxu0 0.0
        %759 = vmatpush2.msra.mxu0 0.0
        %760 = vmatprep.subr.mxu0 0.0
        %761 = vmatpush2.msra.mxu0 0.0
        %762 = vmatprep.subr.mxu0 0.0
        %763 = vmatpush2.msra.mxu0 0.0
        %764 = vmatprep.subr.mxu0 0.0
        %765 = vmatpush2.msra.mxu0 0.0
        %766 = vmatprep.subr.mxu0 0.0
        %767 = vmatpush2.msra.mxu0 0.0
        %768 = vmatprep.mubr.f32.mxu0 0.0
        %769 = vmatmul.mubr.f32.gmra.mxu0 %v561
        %v770 = vpop.f32.mrf.mxu0
        %v771 = vadd.f32 %v558, %v770
        %v772 = vpop.f32.mrf.mxu0
        %v773 = vadd.f32 %v558, %v772
        %774 = vdwg.mxu0
        %v775 = vmax.f32 %v771, 0.0
        %v776 = vmax.f32 %v773, 0.0
        %777 = vst [vmem:[%s282 + $0x30] sm:$0xff] %v775
        %778 = vst [vmem:[%s282 + $0x38] sm:$0xff] %v776
        %s779 = sand.u32 %s163, 1
        %s780 = scalar_lea.sflag [#allocation4], %s779
        %s781 = sand.u32 %s163, 1
        %s782 = smul.addr %s781, 64
        %s783 = scalar_lea.vmem [#allocation7], %s782
        // Predicated region
        $region53: #{tpu_custom_call.1} parent=43 // pred_check
          %p784 = pneg %p173
        $region54: #{tpu_custom_call.1} parent=43 // pred_check_branch
          %786 = sbr.rel (%p784) target = $region56
        $region55: #{tpu_custom_call.1} parent=43 // pred_region
          %s787 = smul.u32 2, %s24
          %s789 = ssub.s32 1024, 1024
          %790 = vsyncadd %s780, %s789
          %s791 = smul.addr %s787, 128
          %s792 = scalar_lea.hbm %s6, %s791
          %s793 = sshll.u32 %s783, 4
          %s794 = int_to_ptr.vmem [resolvable:$true] %s793
          %799 = dma.vmem_to_hbm [thread:$0]  %s794, 1024, %s792, %s780, 256, 512, 16
        $region56: #{tpu_custom_call.1} parent=43 // pred_fallthru
          _
      $region44: #{tpu_custom_call.1} parent=5 // pred_fallthru
        _
      %p800 = scmp.le.s32.totalorder 2, %s19
      // Predicated region
      $region57: #{tpu_custom_call.1} parent=5 // pred_check
        %p801 = pneg %p800
      $region58: #{tpu_custom_call.1} parent=5 // pred_check_branch
        %803 = sbr.rel (%p801) target = $region60
      $region59: #{tpu_custom_call.1} parent=5 // pred_region
        %s804 = ssub.s32 %s19, 2
        // Predicated region
        $region61: #{tpu_custom_call.1} parent=59 // pred_check
          %p805 = pneg %p179
        $region62: #{tpu_custom_call.1} parent=59 // pred_check_branch
          %807 = sbr.rel (%p805) target = $region64
        $region63: #{tpu_custom_call.1} parent=59 // pred_region
          %s808 = sand.u32 %s164, 1
          %s809 = scalar_lea.sflag [#allocation4], %s808
          %s810 = sand.u32 %s164, 1
          %s811 = smul.addr %s810, 64
          %s812 = scalar_lea.vmem [#allocation7], %s811
          %813 = dma.done %s809, 1024
        $region64: #{tpu_custom_call.1} parent=59 // pred_fallthru
          _
      $region60: #{tpu_custom_call.1} parent=5 // pred_fallthru
        _
    $region6: #{tpu_custom_call.1} parent=1 // loop_footer
      %s23 = sadd.s32 1, %s19
    $region7: #{tpu_custom_call.1} parent=1 // loop_footer_branch
      %18 = sbr.rel target = $region3
    $region8: #{tpu_custom_call.1} parent=1 // loop_exit
      _
    %814 = vsyncpa [#allocation3], 1
    %s815 = scalar_lea.sflag [#allocation3], 1
    %816 = vsyncpa %s815, 1
    %817 = vsyncpa [#allocation6], 1
    %818 = vsyncpa [#allocation4], 1
    %s819 = scalar_lea.sflag [#allocation4], 1
    %820 = vsyncpa %s819, 1

</llo_original>
